<compile_context>
chip_gen: v7x
topology: tpu7x:2x2x1
jax: 0.10.0
libtpu: 0.0.40
codegen_flags: <defaults>
</compile_context>

<pallas_src>
import functools

import numpy as np
import jax
import jax.numpy as jnp
from jax.experimental import pallas as pl
from jax.experimental.pallas import tpu as pltpu

_LANE = 128          # vreg lane width
_BF16_SUBLANE = 16   # bf16 sublane tile (minimum useful batch tile)


def _round_up(n, m):
    return ((n + m - 1) // m) * m


def _pad2(a, rows, cols):
    pr, pc = rows - a.shape[0], cols - a.shape[1]
    return a if (pr == 0 and pc == 0) else jnp.pad(a, ((0, pr), (0, pc)))


def _chip_info():
    """Returns (per-core VMEM bytes, #TensorCores per chip).

    Conservative fallback (64 MiB, v7x-like) if the query is unavailable.
    """
    vmem = 64 * 1024 * 1024
    try:
        vmem = int(pltpu.get_tpu_info().vmem_capacity_bytes)
    except Exception:
        pass
    # 64 MiB VMEM/core => v7x (2 TCs/chip); 128 MiB => v5e / v6e (1 TC/chip).
    num_tc = 2 if vmem <= 64 * 1024 * 1024 else 1
    return vmem, num_tc


def _mlp_kernel(x_ref, w1_ref, b1_ref, w2_ref, b2_ref, o_ref, acc_ref):
    """One (batch-tile, hidden-tile) step of sigmoid(relu(x@W1 + b1) @ W2 + b2).

    Weights are pre-transposed to [in, out] layout, so both matmuls are plain
    lhs-last x rhs-first jnp.dot's. x arrives f32 and is cast to the weight
    dtype (bf16) on the VPU; matmuls accumulate in f32; bias/ReLU/sigmoid in f32.
    """
    k = pl.program_id(1)

    @pl.when(k == 0)
    def _init():
        acc_ref[...] = jnp.zeros_like(acc_ref)

    x = x_ref[...].astype(w1_ref.dtype)
    h = jnp.dot(x, w1_ref[...], preferred_element_type=jnp.float32)
    h = jnp.maximum(h + b1_ref[...], 0.0)                       # bias + ReLU (f32)
    acc_ref[...] += jnp.dot(h.astype(w2_ref.dtype), w2_ref[...],
                            preferred_element_type=jnp.float32)

    @pl.when(k == pl.num_programs(1) - 1)
    def _finalize():
        o_ref[...] = jax.nn.sigmoid(acc_ref[...] + b2_ref[...]).astype(o_ref.dtype)


def prepare_weights(w1, b1, w2, b2, compute_dtype=jnp.bfloat16):
    """One-time prep: pad all feature dims to multiples of 128, transpose the
    PyTorch [out, in] weights to [in, out] and cast to the MXU compute dtype.
    Do this ONCE and reuse across forward calls."""
    hidden, d_in = w1.shape
    d_out = w2.shape[0]
    d_in_p = _round_up(d_in, _LANE)
    hid_p = _round_up(hidden, _LANE)
    d_out_p = _round_up(d_out, _LANE)
    return dict(
        w1=_pad2(w1.T, d_in_p, hid_p).astype(compute_dtype),      # [d_in_p, hid_p]
        b1=_pad2(b1.reshape(1, hidden), 1, hid_p).astype(jnp.float32),
        w2=_pad2(w2.T, hid_p, d_out_p).astype(compute_dtype),     # [hid_p, d_out_p]
        b2=_pad2(b2.reshape(1, d_out), 1, d_out_p).astype(jnp.float32),
        dims=(d_in, hidden, d_out),
    )


@functools.partial(
    jax.jit,
    static_argnames=("block_batch", "block_hidden", "d_out", "out_dtype",
                     "vmem_limit", "single_buffer_weights"))
def _forward(x, w1, b1, w2, b2, *, block_batch, block_hidden, d_out, out_dtype,
             vmem_limit, single_buffer_weights):
    B, d_in = x.shape
    d_in_p, hid_p = w1.shape
    d_out_p = w2.shape[1]
    bb, bh = block_batch, block_hidden
    n_k = hid_p // bh
    B_p = _round_up(B, bb)

    # Pad x inside the same jit as the pallas_call (no separately dispatched
    # HBM round-trip); keep f32 — the bf16 cast happens in-kernel on the VPU.
    x_p = _pad2(x, B_p, d_in_p)

    w_bytes = np.dtype(w1.dtype).itemsize
    out_bytes = np.dtype(out_dtype).itemsize
    cost = pl.CostEstimate(
        flops=2 * B_p * (d_in_p * hid_p + hid_p * d_out_p),
        transcendentals=2 * B_p * d_out_p,            # sigmoid = exp + reciprocal
        bytes_accessed=(x_p.size * x_p.dtype.itemsize
                        + (w1.size + w2.size) * w_bytes
                        + (b1.size + b2.size) * 4
                        + B_p * d_out_p * out_bytes),
    )

    # Grid-invariant operands (hidden untiled): a single VMEM buffer suffices.
    inv = (dict(pipeline_mode=pl.Buffered(1))
           if (single_buffer_weights and n_k == 1) else {})

    out_p = pl.pallas_call(
        _mlp_kernel,
        out_shape=jax.ShapeDtypeStruct((B_p, d_out_p), out_dtype),
        grid_spec=pltpu.PrefetchScalarGridSpec(
            num_scalar_prefetch=0,
            grid=(B_p // bb, n_k),
            in_specs=[
                pl.BlockSpec((bb, d_in_p), lambda i, k: (i, 0)),
                # Constant-in-i index_maps: the pipeliner does not re-fetch
                # these after the first step they are needed.
                pl.BlockSpec((d_in_p, bh), lambda i, k: (0, k), **inv),
                pl.BlockSpec((1, bh), lambda i, k: (0, k), **inv),
                pl.BlockSpec((bh, d_out_p), lambda i, k: (k, 0), **inv),
                pl.BlockSpec((1, d_out_p), lambda i, k: (0, 0), **inv),
            ],
            out_specs=pl.BlockSpec((bb, d_out_p), lambda i, k: (i, 0)),
            scratch_shapes=[pltpu.VMEM((bb, d_out_p), jnp.float32)],
        ),
        compiler_params=pltpu.CompilerParams(
            dimension_semantics=("parallel", "arbitrary"),
            vmem_limit_bytes=vmem_limit),
        cost_estimate=cost,
    )(x_p, w1, b1, w2, b2)

    # Padded batch rows / output lanes (sigmoid(0)=0.5) sliced off inside the jit.
    return out_p[:B, :d_out]


def dynamic_weight_generator_prepared(x, params, *, block_batch=None,
                                      block_hidden=None, out_dtype=None,
                                      vmem_budget=None):
    """x: [B, input_dim]; params from prepare_weights(). Returns [B, output_dim]."""
    B, d_in = x.shape
    d_in0, _, d_out0 = params["dims"]
    assert d_in == d_in0, "input feature dim mismatch"
    w1, b1, w2, b2 = params["w1"], params["b1"], params["w2"], params["b2"]
    d_in_p, hid_p = w1.shape
    d_out_p = w2.shape[1]
    out_dtype = np.dtype(x.dtype if out_dtype is None else out_dtype)
    w_bytes = np.dtype(w1.dtype).itemsize
    out_bytes = out_dtype.itemsize

    vmem_cap, num_tc = _chip_info()
    if vmem_budget is None:
        # v7x (64 MiB/core): tight budget; v5e/v6e (128 MiB): big resident tiles.
        vmem_budget = 24 * 2**20 if vmem_cap <= 64 * 2**20 else 80 * 2**20

    def est(bb, bh, w_bufs):
        wts = w_bufs * w_bytes * bh * (d_in_p + d_out_p)     # W1 + W2 tiles
        bias = 2 * 4 * (bh + d_out_p)                        # b1 + b2
        io = 2 * bb * (4 * d_in_p + out_bytes * d_out_p)     # x / out double buffers
        inter = bb * (2 * d_in_p + 6 * bh + 4 * d_out_p)     # bf16 x, f32+bf16 h, f32 y
        acc = 4 * bb * d_out_p                               # f32 accumulator scratch
        return wts + bias + io + inter + acc

    # ---- batch tile: full MXU M-passes (multiples of 128) when B allows ----
    if block_batch is None:
        if B <= _LANE:
            block_batch = max(_BF16_SUBLANE, _round_up(B, _BF16_SUBLANE))
        else:
            block_batch = min(512 if num_tc == 1 else 256, _round_up(B, _LANE))
            if num_tc >= 2:
                # v7x: >=2 grid steps per TensorCore so x DMA pipelines under compute.
                while (block_batch > _LANE
                       and (B + block_batch - 1) // block_batch < 2 * num_tc):
                    block_batch -= _LANE
            while block_batch > _LANE and est(block_batch, hid_p, 1) > vmem_budget:
                block_batch -= _LANE
    block_batch = max(_BF16_SUBLANE, _round_up(block_batch, _BF16_SUBLANE))

    # ---- hidden tile: keep full hidden resident if it fits VMEM, else split ----
    if block_hidden is None:
        block_hidden = hid_p
        if est(block_batch, hid_p, 1) > vmem_budget:
            n_units = hid_p // _LANE
            block_hidden = _LANE
            for tiles in range(2, n_units + 1):   # fewest hidden tiles that fit
                if (n_units % tiles == 0
                        and est(block_batch, (n_units // tiles) * _LANE, 2)
                        <= vmem_budget):
                    block_hidden = (n_units // tiles) * _LANE
                    break
    assert hid_p % block_hidden == 0 and block_hidden % _LANE == 0

    n_bufs = 1 if block_hidden == hid_p else 2
    cap = 56 * 2**20 if vmem_cap <= 64 * 2**20 else 100 * 2**20   # headroom on v7x
    vmem_limit = int(min(cap, max(32 * 2**20,
                                  2 * est(block_batch, block_hidden, n_bufs))))

    kwargs = dict(block_batch=int(block_batch), block_hidden=int(block_hidden),
                  d_out=int(d_out0), out_dtype=out_dtype, vmem_limit=vmem_limit)
    try:
        return _forward(x, w1, b1, w2, b2, single_buffer_weights=True, **kwargs)
    except Exception:
        # pl.Buffered(1) (single-buffered invariant weights) not supported on
        # this jax version -> fall back to the default double-buffered pipeline.
        return _forward(x, w1, b1, w2, b2, single_buffer_weights=False, **kwargs)


def dynamic_weight_generator(x, w1, b1, w2, b2, **kwargs):
    """Convenience wrapper matching the PyTorch signature (w: [out, in]).
    For repeated calls, run prepare_weights() once and reuse the result."""
    params = prepare_weights(w1, b1, w2, b2)
    return dynamic_weight_generator_prepared(x, params, **kwargs)


def _init_linear(key, out_dim, in_dim, dtype=jnp.float32):
    # PyTorch default Linear init: U(-1/sqrt(fan_in), 1/sqrt(fan_in))
    kw, kb = jax.random.split(key)
    bound = 1.0 / float(np.sqrt(in_dim))
    w = jax.random.uniform(kw, (out_dim, in_dim), dtype, -bound, bound)
    b = jax.random.uniform(kb, (out_dim,), dtype, -bound, bound)
    return w, b


def _reference(x, w1, b1, w2, b2):
    return jax.nn.sigmoid(jnp.maximum(x @ w1.T + b1, 0.0) @ w2.T + b2)


if __name__ == "__main__":
    key = jax.random.PRNGKey(0)

    # Case 1: small shapes straight from the module (single grid step).
    k_x, k_fc1, k_fc2, key = jax.random.split(key, 4)
    batch, input_dim, hidden_dim, output_dim = 16, 32, 64, 16
    x = jax.random.normal(k_x, (batch, input_dim), jnp.float32)
    w1, b1 = _init_linear(k_fc1, hidden_dim, input_dim)
    w2, b2 = _init_linear(k_fc2, output_dim, hidden_dim)
    params = prepare_weights(w1, b1, w2, b2)            # pad + transpose + bf16, once
    out = jax.block_until_ready(dynamic_weight_generator_prepared(x, params))
    ref = _reference(x, w1, b1, w2, b2)
    assert out.shape == (batch, output_dim)
    assert jnp.allclose(out, ref, atol=2e-2, rtol=2e-2), \
        float(jnp.max(jnp.abs(out - ref)))

    # Case 2: exercise the multi-step grid (batch tiling + hidden-dim
    # accumulation path with pl.when init/finalize).
    k_x, k_fc1, k_fc2, key = jax.random.split(key, 4)
    batch, input_dim, hidden_dim, output_dim = 192, 96, 384, 80
    x = jax.random.normal(k_x, (batch, input_dim), jnp.float32)
    w1, b1 = _init_linear(k_fc1, hidden_dim, input_dim)
    w2, b2 = _init_linear(k_fc2, output_dim, hidden_dim)
    params = prepare_weights(w1, b1, w2, b2)
    out = jax.block_until_ready(
        dynamic_weight_generator_prepared(x, params,
                                          block_batch=128, block_hidden=128))
    ref = _reference(x, w1, b1, w2, b2)
    assert out.shape == (batch, output_dim)
    assert jnp.allclose(out, ref, atol=2e-2, rtol=2e-2), \
        float(jnp.max(jnp.abs(out - ref)))

    print("KERNEL_OK")
</pallas_src>

<mosaic_0001>
module attributes {stable_mosaic.version = 11 : i64} {
  func.func @_mlp_kernel(%arg0: i32, %arg1: i32, %arg2: memref<16x128xf32, #tpu.memory_space<vmem>>, %arg3: memref<128x128xbf16, #tpu.memory_space<vmem>>, %arg4: memref<1x128xf32, #tpu.memory_space<vmem>>, %arg5: memref<128x128xbf16, #tpu.memory_space<vmem>>, %arg6: memref<1x128xf32, #tpu.memory_space<vmem>>, %arg7: memref<16x128xf32, #tpu.memory_space<vmem>>, %arg8: memref<16x128xf32, #tpu.memory_space<vmem>>) attributes {dimension_semantics = [#tpu.dimension_semantics<parallel>, #tpu.dimension_semantics<arbitrary>], iteration_bounds = array<i64: 1, 1>, scalar_prefetch = 0 : i64, scratch_operands = 1 : i64, tpu.core_type = #tpu.core_type<tc>, window_params = [{transform_indices = @transform_0, window_bounds = array<i64: 16, 128>}, {pipeline_mode = #tpu.pipeline_mode<synchronous>, transform_indices = @transform_1, window_bounds = array<i64: 128, 128>}, {pipeline_mode = #tpu.pipeline_mode<synchronous>, transform_indices = @transform_2, window_bounds = array<i64: 1, 128>}, {pipeline_mode = #tpu.pipeline_mode<synchronous>, transform_indices = @transform_3, window_bounds = array<i64: 128, 128>}, {pipeline_mode = #tpu.pipeline_mode<synchronous>, transform_indices = @transform_4, window_bounds = array<i64: 1, 128>}, {transform_indices = @transform_5, window_bounds = array<i64: 16, 128>}]} {
    %c0_i32 = arith.constant 0 : i32
    %0 = arith.cmpi eq, %arg1, %c0_i32 : i32
    %1 = arith.extui %0 : i1 to i32
    %c0_i32_0 = arith.constant 0 : i32
    %2 = arith.cmpi ne, %1, %c0_i32_0 : i32
    scf.if %2 {
      %cst_16 = arith.constant 0.000000e+00 : f32
      %21 = vector.broadcast %cst_16 : f32 to vector<16x128xf32>
      %c0_17 = arith.constant 0 : index
      %c0_18 = arith.constant 0 : index
      %22 = vector.load %arg8[%c0_17, %c0_18] : memref<16x128xf32, #tpu.memory_space<vmem>>, vector<16x128xf32>
      tpu.vector_store %arg8[%c0_17, %c0_18], %21 {strides = array<i32>} : memref<16x128xf32, #tpu.memory_space<vmem>>, vector<16x128xf32>,
    } else {
    }
    %c0 = arith.constant 0 : index
    %c0_1 = arith.constant 0 : index
    %3 = vector.load %arg2[%c0, %c0_1] : memref<16x128xf32, #tpu.memory_space<vmem>>, vector<16x128xf32>
    %4 = arith.truncf %3 : vector<16x128xf32> to vector<16x128xbf16>
    %c0_2 = arith.constant 0 : index
    %c0_3 = arith.constant 0 : index
    %5 = vector.load %arg3[%c0_2, %c0_3] : memref<128x128xbf16, #tpu.memory_space<vmem>>, vector<128x128xbf16>
    %cst = arith.constant dense<0.000000e+00> : vector<16x128xf32>
    %6 = tpu.matmul %4, %5, %cst {dimension_numbers = #tpu.dot_dimension_numbers<[1], [0], [0], [1], [0, 0, 1, 1], [], []>} : vector<16x128xbf16>, vector<128x128xbf16>, vector<16x128xf32> -> vector<16x128xf32>
    %c0_4 = arith.constant 0 : index
    %c0_5 = arith.constant 0 : index
    %7 = vector.load %arg4[%c0_4, %c0_5] : memref<1x128xf32, #tpu.memory_space<vmem>>, vector<1x128xf32>
    %8 = vector.broadcast %7 : vector<1x128xf32> to vector<16x128xf32>
    %9 = arith.addf %6, %8 : vector<16x128xf32>
    %cst_6 = arith.constant 0.000000e+00 : f32
    %10 = vector.broadcast %cst_6 : f32 to vector<16x128xf32>
    %11 = arith.maximumf %9, %10 : vector<16x128xf32>
    %c0_7 = arith.constant 0 : index
    %c0_8 = arith.constant 0 : index
    %12 = vector.load %arg8[%c0_7, %c0_8] : memref<16x128xf32, #tpu.memory_space<vmem>>, vector<16x128xf32>
    %13 = arith.truncf %11 : vector<16x128xf32> to vector<16x128xbf16>
    %c0_9 = arith.constant 0 : index
    %c0_10 = arith.constant 0 : index
    %14 = vector.load %arg5[%c0_9, %c0_10] : memref<128x128xbf16, #tpu.memory_space<vmem>>, vector<128x128xbf16>
    %cst_11 = arith.constant dense<0.000000e+00> : vector<16x128xf32>
    %15 = tpu.matmul %13, %14, %cst_11 {dimension_numbers = #tpu.dot_dimension_numbers<[1], [0], [0], [1], [0, 0, 1, 1], [], []>} : vector<16x128xbf16>, vector<128x128xbf16>, vector<16x128xf32> -> vector<16x128xf32>
    %16 = arith.addf %12, %15 : vector<16x128xf32>
    %c0_12 = arith.constant 0 : index
    %c0_13 = arith.constant 0 : index
    %17 = vector.load %arg8[%c0_12, %c0_13] : memref<16x128xf32, #tpu.memory_space<vmem>>, vector<16x128xf32>
    tpu.vector_store %arg8[%c0_12, %c0_13], %16 {strides = array<i32>} : memref<16x128xf32, #tpu.memory_space<vmem>>, vector<16x128xf32>,
    %c0_i32_14 = arith.constant 0 : i32
    %18 = arith.cmpi eq, %arg1, %c0_i32_14 : i32
    %19 = arith.extui %18 : i1 to i32
    %c0_i32_15 = arith.constant 0 : i32
    %20 = arith.cmpi ne, %19, %c0_i32_15 : i32
    scf.if %20 {
      %c0_16 = arith.constant 0 : index
      %c0_17 = arith.constant 0 : index
      %21 = vector.load %arg8[%c0_16, %c0_17] : memref<16x128xf32, #tpu.memory_space<vmem>>, vector<16x128xf32>
      %c0_18 = arith.constant 0 : index
      %c0_19 = arith.constant 0 : index
      %22 = vector.load %arg6[%c0_18, %c0_19] : memref<1x128xf32, #tpu.memory_space<vmem>>, vector<1x128xf32>
      %23 = vector.broadcast %22 : vector<1x128xf32> to vector<16x128xf32>
      %24 = arith.addf %21, %23 : vector<16x128xf32>
      %25 = arith.negf %24 : vector<16x128xf32>
      %26 = math.exp %25 : vector<16x128xf32>
      %cst_20 = arith.constant 1.000000e+00 : f32
      %27 = vector.broadcast %cst_20 : f32 to vector<16x128xf32>
      %28 = arith.addf %27, %26 : vector<16x128xf32>
      %29 = arith.divf %27, %28 : vector<16x128xf32>
      %c0_21 = arith.constant 0 : index
      %c0_22 = arith.constant 0 : index
      %30 = vector.load %arg7[%c0_21, %c0_22] : memref<16x128xf32, #tpu.memory_space<vmem>>, vector<16x128xf32>
      tpu.vector_store %arg7[%c0_21, %c0_22], %29 {strides = array<i32>} : memref<16x128xf32, #tpu.memory_space<vmem>>, vector<16x128xf32>,
    } else {
    }
    return
  }
  func.func @transform_0(%arg0: i32, %arg1: i32) -> (i32, i32) {
    %c0_i32 = arith.constant 0 : i32
    %c0_i32_0 = arith.constant 0 : i32
    return %arg0, %c0_i32 : i32, i32
  }
  func.func @transform_1(%arg0: i32, %arg1: i32) -> (i32, i32) {
    %c0_i32 = arith.constant 0 : i32
    %c0_i32_0 = arith.constant 0 : i32
    return %c0_i32, %arg1 : i32, i32
  }
  func.func @transform_2(%arg0: i32, %arg1: i32) -> (i32, i32) {
    %c0_i32 = arith.constant 0 : i32
    %c0_i32_0 = arith.constant 0 : i32
    return %c0_i32, %arg1 : i32, i32
  }
  func.func @transform_3(%arg0: i32, %arg1: i32) -> (i32, i32) {
    %c0_i32 = arith.constant 0 : i32
    %c0_i32_0 = arith.constant 0 : i32
    return %arg1, %c0_i32 : i32, i32
  }
  func.func @transform_4(%arg0: i32, %arg1: i32) -> (i32, i32) {
    %c0_i32 = arith.constant 0 : i32
    %c0_i32_0 = arith.constant 0 : i32
    %c0_i32_1 = arith.constant 0 : i32
    return %c0_i32, %c0_i32_0 : i32, i32
  }
  func.func @transform_5(%arg0: i32, %arg1: i32) -> (i32, i32) {
    %c0_i32 = arith.constant 0 : i32
    %c0_i32_0 = arith.constant 0 : i32
    return %arg0, %c0_i32 : i32, i32
  }
}

module attributes {stable_mosaic.version = 11 : i64} {
  func.func @_mlp_kernel(%arg0: i32, %arg1: i32, %arg2: memref<16x128xf32, #tpu.memory_space<vmem>>, %arg3: memref<128x128xbf16, #tpu.memory_space<vmem>>, %arg4: memref<1x128xf32, #tpu.memory_space<vmem>>, %arg5: memref<128x128xbf16, #tpu.memory_space<vmem>>, %arg6: memref<1x128xf32, #tpu.memory_space<vmem>>, %arg7: memref<16x128xf32, #tpu.memory_space<vmem>>, %arg8: memref<16x128xf32, #tpu.memory_space<vmem>>) attributes {dimension_semantics = [#tpu.dimension_semantics<parallel>, #tpu.dimension_semantics<arbitrary>], iteration_bounds = array<i64: 1, 1>, scalar_prefetch = 0 : i64, scratch_operands = 1 : i64, tpu.core_type = #tpu.core_type<tc>, window_params = [{transform_indices = @transform_0, window_bounds = array<i64: 16, 128>}, {transform_indices = @transform_1, window_bounds = array<i64: 128, 128>}, {transform_indices = @transform_2, window_bounds = array<i64: 1, 128>}, {transform_indices = @transform_3, window_bounds = array<i64: 128, 128>}, {pipeline_mode = #tpu.pipeline_mode<synchronous>, transform_indices = @transform_4, window_bounds = array<i64: 1, 128>}, {transform_indices = @transform_5, window_bounds = array<i64: 16, 128>}]} {
    %c0_i32 = arith.constant 0 : i32
    %0 = arith.cmpi eq, %arg1, %c0_i32 : i32
    %1 = arith.extui %0 : i1 to i32
    %c0_i32_0 = arith.constant 0 : i32
    %2 = arith.cmpi ne, %1, %c0_i32_0 : i32
    scf.if %2 {
      %cst_16 = arith.constant 0.000000e+00 : f32
      %21 = vector.broadcast %cst_16 : f32 to vector<16x128xf32>
      %c0_17 = arith.constant 0 : index
      %c0_18 = arith.constant 0 : index
      %22 = vector.load %arg8[%c0_17, %c0_18] : memref<16x128xf32, #tpu.memory_space<vmem>>, vector<16x128xf32>
      tpu.vector_store %arg8[%c0_17, %c0_18], %21 {strides = array<i32>} : memref<16x128xf32, #tpu.memory_space<vmem>>, vector<16x128xf32>,
    } else {
    }
    %c0 = arith.constant 0 : index
    %c0_1 = arith.constant 0 : index
    %3 = vector.load %arg2[%c0, %c0_1] : memref<16x128xf32, #tpu.memory_space<vmem>>, vector<16x128xf32>
    %4 = arith.truncf %3 : vector<16x128xf32> to vector<16x128xbf16>
    %c0_2 = arith.constant 0 : index
    %c0_3 = arith.constant 0 : index
    %5 = vector.load %arg3[%c0_2, %c0_3] : memref<128x128xbf16, #tpu.memory_space<vmem>>, vector<128x128xbf16>
    %cst = arith.constant dense<0.000000e+00> : vector<16x128xf32>
    %6 = tpu.matmul %4, %5, %cst {dimension_numbers = #tpu.dot_dimension_numbers<[1], [0], [0], [1], [0, 0, 1, 1], [], []>} : vector<16x128xbf16>, vector<128x128xbf16>, vector<16x128xf32> -> vector<16x128xf32>
    %c0_4 = arith.constant 0 : index
    %c0_5 = arith.constant 0 : index
    %7 = vector.load %arg4[%c0_4, %c0_5] : memref<1x128xf32, #tpu.memory_space<vmem>>, vector<1x128xf32>
    %8 = vector.broadcast %7 : vector<1x128xf32> to vector<16x128xf32>
    %9 = arith.addf %6, %8 : vector<16x128xf32>
    %cst_6 = arith.constant 0.000000e+00 : f32
    %10 = vector.broadcast %cst_6 : f32 to vector<16x128xf32>
    %11 = arith.maximumf %9, %10 : vector<16x128xf32>
    %c0_7 = arith.constant 0 : index
    %c0_8 = arith.constant 0 : index
    %12 = vector.load %arg8[%c0_7, %c0_8] : memref<16x128xf32, #tpu.memory_space<vmem>>, vector<16x128xf32>
    %13 = arith.truncf %11 : vector<16x128xf32> to vector<16x128xbf16>
    %c0_9 = arith.constant 0 : index
    %c0_10 = arith.constant 0 : index
    %14 = vector.load %arg5[%c0_9, %c0_10] : memref<128x128xbf16, #tpu.memory_space<vmem>>, vector<128x128xbf16>
    %cst_11 = arith.constant dense<0.000000e+00> : vector<16x128xf32>
    %15 = tpu.matmul %13, %14, %cst_11 {dimension_numbers = #tpu.dot_dimension_numbers<[1], [0], [0], [1], [0, 0, 1, 1], [], []>} : vector<16x128xbf16>, vector<128x128xbf16>, vector<16x128xf32> -> vector<16x128xf32>
    %16 = arith.addf %12, %15 : vector<16x128xf32>
    %c0_12 = arith.constant 0 : index
    %c0_13 = arith.constant 0 : index
    %17 = vector.load %arg8[%c0_12, %c0_13] : memref<16x128xf32, #tpu.memory_space<vmem>>, vector<16x128xf32>
    tpu.vector_store %arg8[%c0_12, %c0_13], %16 {strides = array<i32>} : memref<16x128xf32, #tpu.memory_space<vmem>>, vector<16x128xf32>,
    %c0_i32_14 = arith.constant 0 : i32
    %18 = arith.cmpi eq, %arg1, %c0_i32_14 : i32
    %19 = arith.extui %18 : i1 to i32
    %c0_i32_15 = arith.constant 0 : i32
    %20 = arith.cmpi ne, %19, %c0_i32_15 : i32
    scf.if %20 {
      %c0_16 = arith.constant 0 : index
      %c0_17 = arith.constant 0 : index
      %21 = vector.load %arg8[%c0_16, %c0_17] : memref<16x128xf32, #tpu.memory_space<vmem>>, vector<16x128xf32>
      %c0_18 = arith.constant 0 : index
      %c0_19 = arith.constant 0 : index
      %22 = vector.load %arg6[%c0_18, %c0_19] : memref<1x128xf32, #tpu.memory_space<vmem>>, vector<1x128xf32>
      %23 = vector.broadcast %22 : vector<1x128xf32> to vector<16x128xf32>
      %24 = arith.addf %21, %23 : vector<16x128xf32>
      %25 = arith.negf %24 : vector<16x128xf32>
      %26 = math.exp %25 : vector<16x128xf32>
      %cst_20 = arith.constant 1.000000e+00 : f32
      %27 = vector.broadcast %cst_20 : f32 to vector<16x128xf32>
      %28 = arith.addf %27, %26 : vector<16x128xf32>
      %29 = arith.divf %27, %28 : vector<16x128xf32>
      %c0_21 = arith.constant 0 : index
      %c0_22 = arith.constant 0 : index
      %30 = vector.load %arg7[%c0_21, %c0_22] : memref<16x128xf32, #tpu.memory_space<vmem>>, vector<16x128xf32>
      tpu.vector_store %arg7[%c0_21, %c0_22], %29 {strides = array<i32>} : memref<16x128xf32, #tpu.memory_space<vmem>>, vector<16x128xf32>,
    } else {
    }
    return
  }
  func.func @transform_0(%arg0: i32, %arg1: i32) -> (i32, i32) {
    %c0_i32 = arith.constant 0 : i32
    %c0_i32_0 = arith.constant 0 : i32
    return %arg0, %c0_i32 : i32, i32
  }
  func.func @transform_1(%arg0: i32, %arg1: i32) -> (i32, i32) {
    %c0_i32 = arith.constant 0 : i32
    %c0_i32_0 = arith.constant 0 : i32
    return %c0_i32, %arg1 : i32, i32
  }
  func.func @transform_2(%arg0: i32, %arg1: i32) -> (i32, i32) {
    %c0_i32 = arith.constant 0 : i32
    %c0_i32_0 = arith.constant 0 : i32
    return %c0_i32, %arg1 : i32, i32
  }
  func.func @transform_3(%arg0: i32, %arg1: i32) -> (i32, i32) {
    %c0_i32 = arith.constant 0 : i32
    %c0_i32_0 = arith.constant 0 : i32
    return %arg1, %c0_i32 : i32, i32
  }
  func.func @transform_4(%arg0: i32, %arg1: i32) -> (i32, i32) {
    %c0_i32 = arith.constant 0 : i32
    %c0_i32_0 = arith.constant 0 : i32
    %c0_i32_1 = arith.constant 0 : i32
    return %c0_i32, %c0_i32_0 : i32, i32
  }
  func.func @transform_5(%arg0: i32, %arg1: i32) -> (i32, i32) {
    %c0_i32 = arith.constant 0 : i32
    %c0_i32_0 = arith.constant 0 : i32
    return %arg0, %c0_i32 : i32, i32
  }
}

</mosaic_0001>

<llo_original>
// kernel: _forward.1
$region0: #{_forward.1}
  #allocation0 [shape = 'u32[]', space=smem, size = 0x4, offset = 0x4, fixed_abs, tag = 'smem constant byte address 0x4 - core index']
  #allocation1 [shape = 'u32[144,128]{1,0:T(1,128)}', space=vmem, size = 0x12000, scoped, tag = 'internal scratch']
  #allocation2 [shape = 'f32[16,128]{1,0:T(8,128)}', space=vmem, size = 0x2000, scoped, tag = 'scratch operand']
  %s0 = inlined_call_operand.vmem [shape: f32[16,128], index: 0, kind: input, shape index: {}]
  %s1 = inlined_call_operand.hbm [shape: bf16[128,128], index: 1, kind: input, shape index: {}]
  %s2 = inlined_call_operand.vmem [shape: f32[1,128], index: 2, kind: input, shape index: {}]
  %s3 = inlined_call_operand.hbm [shape: bf16[128,128], index: 3, kind: input, shape index: {}]
  %s4 = inlined_call_operand.vmem [shape: f32[1,128], index: 4, kind: input, shape index: {}]
  %s5 = inlined_call_operand.hbm [shape: f32[16,128], index: 5, kind: output, shape index: {}]
  %s6 = sld [smem:[#allocation0]]
  $region46: #{_forward.1} parent=0
    _
  %s8 = ssub.s32 1, %s6
  %s9 = scalar_select 0, %s8, %s6
  $region1: #{_forward.1} parent=0
    #allocation3 [shape = 'u8[32768]{0}', space=vmem, size = 0x8000, scoped, tag = 'input window, operand 1, single buffered']
    #allocation4 [shape = 's32[1]{0}', space=sflag, size = 0x4, scoped, tag = 'scoped memory for _forward.1']
    #allocation5 [shape = 's32[1]{0}', space=sflag, size = 0x4, scoped, tag = 'scoped memory for _forward.1']
    #allocation6 [shape = 'u8[32768]{0}', space=vmem, size = 0x8000, scoped, tag = 'input window, operand 3, single buffered']
    #allocation7 [shape = 's32[1]{0}', space=sflag, size = 0x4, scoped, tag = 'scoped memory for _forward.1']
    #allocation8 [shape = 'u8[8192]{0}', space=vmem, size = 0x2000, scoped, tag = 'output window, operand 0, single buffered']
    %10 = vsyncpa [#allocation4], 0
    %11 = vsyncpa [#allocation7], 0
    %12 = vsyncpa [#allocation5], 0
    // Predicated region
    $region2: #{_forward.1} parent=1 // pred_check
      _
    $region3: #{_forward.1} parent=1 // pred_check_branch
      %14 = sbr.rel (0) target = $region5
    $region4: #{_forward.1} parent=1 // pred_region
      _
    $region5: #{_forward.1} parent=1 // pred_fallthru
      _
    // Predicated region
    $region6: #{_forward.1} parent=1 // pred_check
      _
    $region7: #{_forward.1} parent=1 // pred_check_branch
      %16 = sbr.rel (0) target = $region9
    $region8: #{_forward.1} parent=1 // pred_region
      %s18 = ssub.s32 1024, 1024
      %19 = vsyncadd [#allocation4], %s18
      %s20 = sshll.u32 [#allocation3], 4
      %s21 = int_to_ptr.vmem [resolvable:$true] %s20
      %26 = dma.hbm_to_vmem [thread:$0]  %s1, 1024, %s21, [#allocation4], 64, 64, 4
    $region9: #{_forward.1} parent=1 // pred_fallthru
      _
    // Predicated region
    $region10: #{_forward.1} parent=1 // pred_check
      _
    $region11: #{_forward.1} parent=1 // pred_check_branch
      %28 = sbr.rel (0) target = $region13
    $region12: #{_forward.1} parent=1 // pred_region
      _
    $region13: #{_forward.1} parent=1 // pred_fallthru
      _
    // Predicated region
    $region14: #{_forward.1} parent=1 // pred_check
      _
    $region15: #{_forward.1} parent=1 // pred_check_branch
      %30 = sbr.rel (0) target = $region17
    $region16: #{_forward.1} parent=1 // pred_region
      %s32 = ssub.s32 1024, 1024
      %33 = vsyncadd [#allocation7], %s32
      %s34 = sshll.u32 [#allocation6], 4
      %s35 = int_to_ptr.vmem [resolvable:$true] %s34
      %40 = dma.hbm_to_vmem [thread:$0]  %s3, 1024, %s35, [#allocation7], 64, 64, 4
    $region17: #{_forward.1} parent=1 // pred_fallthru
      _
    // Predicated region
    $region18: #{_forward.1} parent=1 // pred_check
      _
    $region19: #{_forward.1} parent=1 // pred_check_branch
      %42 = sbr.rel (0) target = $region21
    $region20: #{_forward.1} parent=1 // pred_region
      _
    $region21: #{_forward.1} parent=1 // pred_fallthru
      _
    // Predicated region
    $region22: #{_forward.1} parent=1 // pred_check
      _
    $region23: #{_forward.1} parent=1 // pred_check_branch
      %44 = sbr.rel (0) target = $region25
    $region24: #{_forward.1} parent=1 // pred_region
      %45 = dma.done [#allocation4], 1024
    $region25: #{_forward.1} parent=1 // pred_fallthru
      _
    // Predicated region
    $region26: #{_forward.1} parent=1 // pred_check
      _
    $region27: #{_forward.1} parent=1 // pred_check_branch
      %47 = sbr.rel (0) target = $region29
    $region28: #{_forward.1} parent=1 // pred_region
      %48 = dma.done [#allocation7], 1024
    $region29: #{_forward.1} parent=1 // pred_fallthru
      _
    %p50 = scmp.eq.s32.totalorder 0, 0
    // Predicated region
    $region30: #{_forward.1} parent=1 // pred_check
      %p51 = pneg %p50
    $region31: #{_forward.1} parent=1 // pred_check_branch
      %53 = sbr.rel (%p51) target = $region33
    $region32: #{_forward.1} parent=1 // pred_region
      %54 = vst [vmem:[#allocation2] sm:$0xff] 0.0
      %55 = vst [vmem:[#allocation2 + $0x8] sm:$0xff] 0.0
    $region33: #{_forward.1} parent=1 // pred_fallthru
      _
    %v56 = vld [vmem:[%s0] sm:$0xff]
    %v57 = vld [vmem:[%s0 + $0x8] sm:$0xff]
    %v58 = vpack.c.bf16 %v57, %v56
    %v59 = vld [vmem:[#allocation3] sm:$0xf]
    %v60 = vld [vmem:[#allocation3 + $0x4] sm:$0xf]
    %v61 = vld [vmem:[#allocation3 + $0x8] sm:$0xf]
    %v62 = vld [vmem:[#allocation3 + $0xc] sm:$0xf]
    %v63 = vld [vmem:[#allocation3 + $0x10] sm:$0xf]
    %v64 = vld [vmem:[#allocation3 + $0x14] sm:$0xf]
    %v65 = vld [vmem:[#allocation3 + $0x18] sm:$0xf]
    %v66 = vld [vmem:[#allocation3 + $0x1c] sm:$0xf]
    %v67 = vld [vmem:[#allocation3 + $0x20] sm:$0xf]
    %v68 = vld [vmem:[#allocation3 + $0x24] sm:$0xf]
    %v69 = vld [vmem:[#allocation3 + $0x28] sm:$0xf]
    %v70 = vld [vmem:[#allocation3 + $0x2c] sm:$0xf]
    %v71 = vld [vmem:[#allocation3 + $0x30] sm:$0xf]
    %v72 = vld [vmem:[#allocation3 + $0x34] sm:$0xf]
    %v73 = vld [vmem:[#allocation3 + $0x38] sm:$0xf]
    %v74 = vld [vmem:[#allocation3 + $0x3c] sm:$0xf]
    %v75 = vld [vmem:[%s2] sm:$0x1]
    %v77 = vlaneseq
    %v78 = vshrl.u32 %v77, 7
    %v79 = vsub.s32 0, %v78
    %v80 = vrot.slane %v75, %v79
    %v98 = vunpack.c.l.b16 %v59
    %v99 = vunpack.c.l.b16 %v60
    %v100 = vunpack.c.l.b16 %v61
    %v101 = vunpack.c.l.b16 %v62
    %v102 = vunpack.c.l.b16 %v63
    %v103 = vunpack.c.l.b16 %v64
    %v104 = vunpack.c.l.b16 %v65
    %v105 = vunpack.c.l.b16 %v66
    %v106 = vunpack.c.l.b16 %v67
    %v107 = vunpack.c.l.b16 %v68
    %v108 = vunpack.c.l.b16 %v69
    %v109 = vunpack.c.l.b16 %v70
    %v110 = vunpack.c.l.b16 %v71
    %v111 = vunpack.c.l.b16 %v72
    %v112 = vunpack.c.l.b16 %v73
    %v113 = vunpack.c.l.b16 %v74
    %v114 = vpack.c.b16 %v99, %v98
    %v115 = vpack.c.b16 %v101, %v100
    %v116 = vpack.c.b16 %v103, %v102
    %v117 = vpack.c.b16 %v105, %v104
    %v118 = vpack.c.b16 %v107, %v106
    %v119 = vpack.c.b16 %v109, %v108
    %v120 = vpack.c.b16 %v111, %v110
    %v121 = vpack.c.b16 %v113, %v112
    %130 = vmatprep.subr.bf16.mxu0 0
    %131 = vmatpush1.bf16.msra.mxu0 %v114
    %132 = vmatprep.subr.bf16.mxu0 0
    %133 = vmatpush1.bf16.msra.mxu0 %v115
    %134 = vmatprep.subr.bf16.mxu0 0
    %135 = vmatpush1.bf16.msra.mxu0 %v116
    %136 = vmatprep.subr.bf16.mxu0 0
    %137 = vmatpush1.bf16.msra.mxu0 %v117
    %138 = vmatprep.subr.bf16.mxu0 0
    %139 = vmatpush1.bf16.msra.mxu0 %v118
    %140 = vmatprep.subr.bf16.mxu0 0
    %141 = vmatpush1.bf16.msra.mxu0 %v119
    %142 = vmatprep.subr.bf16.mxu0 0
    %143 = vmatpush1.bf16.msra.mxu0 %v120
    %144 = vmatprep.subr.bf16.mxu0 0
    %145 = vmatpush1.bf16.msra.mxu0 %v121
    %146 = vmatprep.subr.bf16.mxu0 0
    %147 = vmatpush1.bf16.msra.mxu0 0
    %148 = vmatprep.subr.bf16.mxu0 0
    %149 = vmatpush1.bf16.msra.mxu0 0
    %150 = vmatprep.subr.bf16.mxu0 0
    %151 = vmatpush1.bf16.msra.mxu0 0
    %152 = vmatprep.subr.bf16.mxu0 0
    %153 = vmatpush1.bf16.msra.mxu0 0
    %154 = vmatprep.subr.bf16.mxu0 0
    %155 = vmatpush1.bf16.msra.mxu0 0
    %156 = vmatprep.subr.bf16.mxu0 0
    %157 = vmatpush1.bf16.msra.mxu0 0
    %158 = vmatprep.subr.bf16.mxu0 0
    %159 = vmatpush1.bf16.msra.mxu0 0
    %160 = vmatprep.subr.bf16.mxu0 0
    %161 = vmatpush1.bf16.msra.mxu0 0
    %162 = vmatprep.mubr.bf16.mxu0 0
    %163 = vmatmul.mubr.bf16.gmra.mrb[0].mxu0 %v58
    %v164 = vpop.f32.mrb[0].mxu0
    %v165 = vadd.f32 %v80, %v164
    %v166 = vpop.f32.mrb[0].mxu0
    %v167 = vpop.f32.mrb[0].mxu0
    %v168 = vadd.f32 %v80, %v167
    %v169 = vpop.f32.mrb[0].mxu0
    %170 = vdwg.mxu0
    %v171 = vmax.f32 %v165, 0.0
    %v172 = vmax.f32 %v168, 0.0
    %v173 = vld [vmem:[#allocation2] sm:$0xff]
    %v174 = vld [vmem:[#allocation2 + $0x8] sm:$0xff]
    %v175 = vpack.c.bf16 %v172, %v171
    %v176 = vld [vmem:[#allocation6] sm:$0xf]
    %v177 = vld [vmem:[#allocation6 + $0x4] sm:$0xf]
    %v178 = vld [vmem:[#allocation6 + $0x8] sm:$0xf]
    %v179 = vld [vmem:[#allocation6 + $0xc] sm:$0xf]
    %v180 = vld [vmem:[#allocation6 + $0x10] sm:$0xf]
    %v181 = vld [vmem:[#allocation6 + $0x14] sm:$0xf]
    %v182 = vld [vmem:[#allocation6 + $0x18] sm:$0xf]
    %v183 = vld [vmem:[#allocation6 + $0x1c] sm:$0xf]
    %v184 = vld [vmem:[#allocation6 + $0x20] sm:$0xf]
    %v185 = vld [vmem:[#allocation6 + $0x24] sm:$0xf]
    %v186 = vld [vmem:[#allocation6 + $0x28] sm:$0xf]
    %v187 = vld [vmem:[#allocation6 + $0x2c] sm:$0xf]
    %v188 = vld [vmem:[#allocation6 + $0x30] sm:$0xf]
    %v189 = vld [vmem:[#allocation6 + $0x34] sm:$0xf]
    %v190 = vld [vmem:[#allocation6 + $0x38] sm:$0xf]
    %v191 = vld [vmem:[#allocation6 + $0x3c] sm:$0xf]
    %v208 = vunpack.c.l.b16 %v176
    %v209 = vunpack.c.l.b16 %v177
    %v210 = vunpack.c.l.b16 %v178
    %v211 = vunpack.c.l.b16 %v179
    %v212 = vunpack.c.l.b16 %v180
    %v213 = vunpack.c.l.b16 %v181
    %v214 = vunpack.c.l.b16 %v182
    %v215 = vunpack.c.l.b16 %v183
    %v216 = vunpack.c.l.b16 %v184
    %v217 = vunpack.c.l.b16 %v185
    %v218 = vunpack.c.l.b16 %v186
    %v219 = vunpack.c.l.b16 %v187
    %v220 = vunpack.c.l.b16 %v188
    %v221 = vunpack.c.l.b16 %v189
    %v222 = vunpack.c.l.b16 %v190
    %v223 = vunpack.c.l.b16 %v191
    %v224 = vpack.c.b16 %v209, %v208
    %v225 = vpack.c.b16 %v211, %v210
    %v226 = vpack.c.b16 %v213, %v212
    %v227 = vpack.c.b16 %v215, %v214
    %v228 = vpack.c.b16 %v217, %v216
    %v229 = vpack.c.b16 %v219, %v218
    %v230 = vpack.c.b16 %v221, %v220
    %v231 = vpack.c.b16 %v223, %v222
    %240 = vmatprep.subr.bf16.mxu0 0
    %241 = vmatpush1.bf16.msra.mxu0 %v224
    %242 = vmatprep.subr.bf16.mxu0 0
    %243 = vmatpush1.bf16.msra.mxu0 %v225
    %244 = vmatprep.subr.bf16.mxu0 0
    %245 = vmatpush1.bf16.msra.mxu0 %v226
    %246 = vmatprep.subr.bf16.mxu0 0
    %247 = vmatpush1.bf16.msra.mxu0 %v227
    %248 = vmatprep.subr.bf16.mxu0 0
    %249 = vmatpush1.bf16.msra.mxu0 %v228
    %250 = vmatprep.subr.bf16.mxu0 0
    %251 = vmatpush1.bf16.msra.mxu0 %v229
    %252 = vmatprep.subr.bf16.mxu0 0
    %253 = vmatpush1.bf16.msra.mxu0 %v230
    %254 = vmatprep.subr.bf16.mxu0 0
    %255 = vmatpush1.bf16.msra.mxu0 %v231
    %256 = vmatprep.subr.bf16.mxu0 0
    %257 = vmatpush1.bf16.msra.mxu0 0
    %258 = vmatprep.subr.bf16.mxu0 0
    %259 = vmatpush1.bf16.msra.mxu0 0
    %260 = vmatprep.subr.bf16.mxu0 0
    %261 = vmatpush1.bf16.msra.mxu0 0
    %262 = vmatprep.subr.bf16.mxu0 0
    %263 = vmatpush1.bf16.msra.mxu0 0
    %264 = vmatprep.subr.bf16.mxu0 0
    %265 = vmatpush1.bf16.msra.mxu0 0
    %266 = vmatprep.subr.bf16.mxu0 0
    %267 = vmatpush1.bf16.msra.mxu0 0
    %268 = vmatprep.subr.bf16.mxu0 0
    %269 = vmatpush1.bf16.msra.mxu0 0
    %270 = vmatprep.subr.bf16.mxu0 0
    %271 = vmatpush1.bf16.msra.mxu0 0
    %272 = vmatprep.mubr.bf16.mxu0 0
    %273 = vmatmul.mubr.bf16.gmra.mrb[0].mxu0 %v175
    %v274 = vpop.f32.mrb[0].mxu0
    %v275 = vadd.f32 0.0, %v274
    %v276 = vpop.f32.mrb[0].mxu0
    %v277 = vpop.f32.mrb[0].mxu0
    %v278 = vadd.f32 0.0, %v277
    %v279 = vpop.f32.mrb[0].mxu0
    %280 = vdwg.mxu0
    %v281 = vadd.f32 %v173, %v275
    %v282 = vadd.f32 %v174, %v278
    %283 = vst [vmem:[#allocation2] sm:$0xff] %v281
    %284 = vst [vmem:[#allocation2 + $0x8] sm:$0xff] %v282
    // Predicated region
    $region34: #{_forward.1} parent=1 // pred_check
      %p285 = pneg %p50
    $region35: #{_forward.1} parent=1 // pred_check_branch
      %287 = sbr.rel (%p285) target = $region37
    $region36: #{_forward.1} parent=1 // pred_region
      %v288 = vld [vmem:[#allocation2] sm:$0xff]
      %v289 = vld [vmem:[#allocation2 + $0x8] sm:$0xff]
      %v290 = vld [vmem:[%s4] sm:$0x1]
      %v292 = vlaneseq
      %v293 = vshrl.u32 %v292, 7
      %v294 = vsub.s32 0, %v293
      %v295 = vrot.slane %v290, %v294
      %v297 = vadd.f32 %v288, %v295
      %v298 = vadd.f32 %v289, %v295
      %v299 = vxor.u32 %v297, 2147483648
      %v300 = vxor.u32 %v298, 2147483648
      %v301 = vmul.f32 %v299, 1.442695
      %v302 = vpow.pop %v301
      %v303 = vmul.f32 %v300, 1.442695
      %v304 = vpow.pop %v303
      %v305 = vadd.f32 %v302, 1.0
      %v306 = vadd.f32 %v304, 1.0
      %v307 = vrcp.pop %v305
      %v308 = vmul.f32 1.0, %v307
      %v309 = vrcp.pop %v306
      %v310 = vmul.f32 1.0, %v309
      %311 = vst [vmem:[#allocation8] sm:$0xff] %v308
      %312 = vst [vmem:[#allocation8 + $0x8] sm:$0xff] %v310
    $region37: #{_forward.1} parent=1 // pred_fallthru
      _
    // Predicated region
    $region38: #{_forward.1} parent=1 // pred_check
      _
    $region39: #{_forward.1} parent=1 // pred_check_branch
      %314 = sbr.rel (0) target = $region41
    $region40: #{_forward.1} parent=1 // pred_region
      %s316 = ssub.s32 256, 256
      %317 = vsyncadd [#allocation5], %s316
      %s318 = sshll.u32 [#allocation8], 4
      %s319 = int_to_ptr.vmem [resolvable:$true] %s318
      %324 = dma.vmem_to_hbm [thread:$0]  %s319, 256, %s5, [#allocation5], 128, 128, 8
    $region41: #{_forward.1} parent=1 // pred_fallthru
      _
    // Predicated region
    $region42: #{_forward.1} parent=1 // pred_check
      _
    $region43: #{_forward.1} parent=1 // pred_check_branch
      %326 = sbr.rel (0) target = $region45
    $region44: #{_forward.1} parent=1 // pred_region
      %327 = dma.done [#allocation5], 256
    $region45: #{_forward.1} parent=1 // pred_fallthru
      _
    %328 = vsyncpa [#allocation4], 1
    %329 = vsyncpa [#allocation7], 1
    %330 = vsyncpa [#allocation5], 1

// kernel: _forward.1
$region0: #{_forward.1}
  #allocation0 [shape = 'u32[]', space=smem, size = 0x4, offset = 0x4, fixed_abs, tag = 'smem constant byte address 0x4 - core index']
  #allocation1 [shape = 'u32[144,128]{1,0:T(1,128)}', space=vmem, size = 0x12000, scoped, tag = 'internal scratch']
  #allocation2 [shape = 'f32[16,128]{1,0:T(8,128)}', space=vmem, size = 0x2000, scoped, tag = 'scratch operand']
  %s0 = inlined_call_operand.vmem [shape: f32[16,128], index: 0, kind: input, shape index: {}]
  %s1 = inlined_call_operand.hbm [shape: bf16[128,128], index: 1, kind: input, shape index: {}]
  %s2 = inlined_call_operand.vmem [shape: f32[1,128], index: 2, kind: input, shape index: {}]
  %s3 = inlined_call_operand.hbm [shape: bf16[128,128], index: 3, kind: input, shape index: {}]
  %s4 = inlined_call_operand.vmem [shape: f32[1,128], index: 4, kind: input, shape index: {}]
  %s5 = inlined_call_operand.hbm [shape: f32[16,128], index: 5, kind: output, shape index: {}]
  %s6 = sld [smem:[#allocation0]]
  $region46: #{_forward.1} parent=0
    _
  %s8 = ssub.s32 1, %s6
  %s9 = scalar_select 0, %s8, %s6
  $region1: #{_forward.1} parent=0
    #allocation3 [shape = 'u8[32768]{0}', space=vmem, size = 0x8000, scoped, tag = 'input window, operand 1, single buffered']
    #allocation4 [shape = 's32[1]{0}', space=sflag, size = 0x4, scoped, tag = 'scoped memory for _forward.1']
    #allocation5 [shape = 's32[1]{0}', space=sflag, size = 0x4, scoped, tag = 'scoped memory for _forward.1']
    #allocation6 [shape = 'u8[32768]{0}', space=vmem, size = 0x8000, scoped, tag = 'input window, operand 3, single buffered']
    #allocation7 [shape = 's32[1]{0}', space=sflag, size = 0x4, scoped, tag = 'scoped memory for _forward.1']
    #allocation8 [shape = 'u8[8192]{0}', space=vmem, size = 0x2000, scoped, tag = 'output window, operand 0, single buffered']
    %10 = vsyncpa [#allocation4], 0
    %11 = vsyncpa [#allocation7], 0
    %12 = vsyncpa [#allocation5], 0
    // Predicated region
    $region2: #{_forward.1} parent=1 // pred_check
      _
    $region3: #{_forward.1} parent=1 // pred_check_branch
      %14 = sbr.rel (0) target = $region5
    $region4: #{_forward.1} parent=1 // pred_region
      _
    $region5: #{_forward.1} parent=1 // pred_fallthru
      _
    // Predicated region
    $region6: #{_forward.1} parent=1 // pred_check
      _
    $region7: #{_forward.1} parent=1 // pred_check_branch
      %16 = sbr.rel (0) target = $region9
    $region8: #{_forward.1} parent=1 // pred_region
      %s18 = ssub.s32 1024, 1024
      %19 = vsyncadd [#allocation4], %s18
      %s20 = sshll.u32 [#allocation3], 4
      %s21 = int_to_ptr.vmem [resolvable:$true] %s20
      %26 = dma.hbm_to_vmem [thread:$0]  %s1, 1024, %s21, [#allocation4], 64, 64, 4
    $region9: #{_forward.1} parent=1 // pred_fallthru
      _
    // Predicated region
    $region10: #{_forward.1} parent=1 // pred_check
      _
    $region11: #{_forward.1} parent=1 // pred_check_branch
      %28 = sbr.rel (0) target = $region13
    $region12: #{_forward.1} parent=1 // pred_region
      _
    $region13: #{_forward.1} parent=1 // pred_fallthru
      _
    // Predicated region
    $region14: #{_forward.1} parent=1 // pred_check
      _
    $region15: #{_forward.1} parent=1 // pred_check_branch
      %30 = sbr.rel (0) target = $region17
    $region16: #{_forward.1} parent=1 // pred_region
      %s32 = ssub.s32 1024, 1024
      %33 = vsyncadd [#allocation7], %s32
      %s34 = sshll.u32 [#allocation6], 4
      %s35 = int_to_ptr.vmem [resolvable:$true] %s34
      %40 = dma.hbm_to_vmem [thread:$0]  %s3, 1024, %s35, [#allocation7], 64, 64, 4
    $region17: #{_forward.1} parent=1 // pred_fallthru
      _
    // Predicated region
    $region18: #{_forward.1} parent=1 // pred_check
      _
    $region19: #{_forward.1} parent=1 // pred_check_branch
      %42 = sbr.rel (0) target = $region21
    $region20: #{_forward.1} parent=1 // pred_region
      _
    $region21: #{_forward.1} parent=1 // pred_fallthru
      _
    // Predicated region
    $region22: #{_forward.1} parent=1 // pred_check
      _
    $region23: #{_forward.1} parent=1 // pred_check_branch
      %44 = sbr.rel (0) target = $region25
    $region24: #{_forward.1} parent=1 // pred_region
      %45 = dma.done [#allocation4], 1024
    $region25: #{_forward.1} parent=1 // pred_fallthru
      _
    // Predicated region
    $region26: #{_forward.1} parent=1 // pred_check
      _
    $region27: #{_forward.1} parent=1 // pred_check_branch
      %47 = sbr.rel (0) target = $region29
    $region28: #{_forward.1} parent=1 // pred_region
      %48 = dma.done [#allocation7], 1024
    $region29: #{_forward.1} parent=1 // pred_fallthru
      _
    %p50 = scmp.eq.s32.totalorder 0, 0
    // Predicated region
    $region30: #{_forward.1} parent=1 // pred_check
      %p51 = pneg %p50
    $region31: #{_forward.1} parent=1 // pred_check_branch
      %53 = sbr.rel (%p51) target = $region33
    $region32: #{_forward.1} parent=1 // pred_region
      %54 = vst [vmem:[#allocation2] sm:$0xff] 0.0
      %55 = vst [vmem:[#allocation2 + $0x8] sm:$0xff] 0.0
    $region33: #{_forward.1} parent=1 // pred_fallthru
      _
    %v56 = vld [vmem:[%s0] sm:$0xff]
    %v57 = vld [vmem:[%s0 + $0x8] sm:$0xff]
    %v58 = vpack.c.bf16 %v57, %v56
    %v59 = vld [vmem:[#allocation3] sm:$0xf]
    %v60 = vld [vmem:[#allocation3 + $0x4] sm:$0xf]
    %v61 = vld [vmem:[#allocation3 + $0x8] sm:$0xf]
    %v62 = vld [vmem:[#allocation3 + $0xc] sm:$0xf]
    %v63 = vld [vmem:[#allocation3 + $0x10] sm:$0xf]
    %v64 = vld [vmem:[#allocation3 + $0x14] sm:$0xf]
    %v65 = vld [vmem:[#allocation3 + $0x18] sm:$0xf]
    %v66 = vld [vmem:[#allocation3 + $0x1c] sm:$0xf]
    %v67 = vld [vmem:[#allocation3 + $0x20] sm:$0xf]
    %v68 = vld [vmem:[#allocation3 + $0x24] sm:$0xf]
    %v69 = vld [vmem:[#allocation3 + $0x28] sm:$0xf]
    %v70 = vld [vmem:[#allocation3 + $0x2c] sm:$0xf]
    %v71 = vld [vmem:[#allocation3 + $0x30] sm:$0xf]
    %v72 = vld [vmem:[#allocation3 + $0x34] sm:$0xf]
    %v73 = vld [vmem:[#allocation3 + $0x38] sm:$0xf]
    %v74 = vld [vmem:[#allocation3 + $0x3c] sm:$0xf]
    %v75 = vld [vmem:[%s2] sm:$0x1]
    %v77 = vlaneseq
    %v78 = vshrl.u32 %v77, 7
    %v79 = vsub.s32 0, %v78
    %v80 = vrot.slane %v75, %v79
    %v98 = vunpack.c.l.b16 %v59
    %v99 = vunpack.c.l.b16 %v60
    %v100 = vunpack.c.l.b16 %v61
    %v101 = vunpack.c.l.b16 %v62
    %v102 = vunpack.c.l.b16 %v63
    %v103 = vunpack.c.l.b16 %v64
    %v104 = vunpack.c.l.b16 %v65
    %v105 = vunpack.c.l.b16 %v66
    %v106 = vunpack.c.l.b16 %v67
    %v107 = vunpack.c.l.b16 %v68
    %v108 = vunpack.c.l.b16 %v69
    %v109 = vunpack.c.l.b16 %v70
    %v110 = vunpack.c.l.b16 %v71
    %v111 = vunpack.c.l.b16 %v72
    %v112 = vunpack.c.l.b16 %v73
    %v113 = vunpack.c.l.b16 %v74
    %v114 = vpack.c.b16 %v99, %v98
    %v115 = vpack.c.b16 %v101, %v100
    %v116 = vpack.c.b16 %v103, %v102
    %v117 = vpack.c.b16 %v105, %v104
    %v118 = vpack.c.b16 %v107, %v106
    %v119 = vpack.c.b16 %v109, %v108
    %v120 = vpack.c.b16 %v111, %v110
    %v121 = vpack.c.b16 %v113, %v112
    %130 = vmatprep.subr.bf16.mxu0 0
    %131 = vmatpush1.bf16.msra.mxu0 %v114
    %132 = vmatprep.subr.bf16.mxu0 0
    %133 = vmatpush1.bf16.msra.mxu0 %v115
    %134 = vmatprep.subr.bf16.mxu0 0
    %135 = vmatpush1.bf16.msra.mxu0 %v116
    %136 = vmatprep.subr.bf16.mxu0 0
    %137 = vmatpush1.bf16.msra.mxu0 %v117
    %138 = vmatprep.subr.bf16.mxu0 0
    %139 = vmatpush1.bf16.msra.mxu0 %v118
    %140 = vmatprep.subr.bf16.mxu0 0
    %141 = vmatpush1.bf16.msra.mxu0 %v119
    %142 = vmatprep.subr.bf16.mxu0 0
    %143 = vmatpush1.bf16.msra.mxu0 %v120
    %144 = vmatprep.subr.bf16.mxu0 0
    %145 = vmatpush1.bf16.msra.mxu0 %v121
    %146 = vmatprep.subr.bf16.mxu0 0
    %147 = vmatpush1.bf16.msra.mxu0 0
    %148 = vmatprep.subr.bf16.mxu0 0
    %149 = vmatpush1.bf16.msra.mxu0 0
    %150 = vmatprep.subr.bf16.mxu0 0
    %151 = vmatpush1.bf16.msra.mxu0 0
    %152 = vmatprep.subr.bf16.mxu0 0
    %153 = vmatpush1.bf16.msra.mxu0 0
    %154 = vmatprep.subr.bf16.mxu0 0
    %155 = vmatpush1.bf16.msra.mxu0 0
    %156 = vmatprep.subr.bf16.mxu0 0
    %157 = vmatpush1.bf16.msra.mxu0 0
    %158 = vmatprep.subr.bf16.mxu0 0
    %159 = vmatpush1.bf16.msra.mxu0 0
    %160 = vmatprep.subr.bf16.mxu0 0
    %161 = vmatpush1.bf16.msra.mxu0 0
    %162 = vmatprep.mubr.bf16.mxu0 0
    %163 = vmatmul.mubr.bf16.gmra.mrb[0].mxu0 %v58
    %v164 = vpop.f32.mrb[0].mxu0
    %v165 = vadd.f32 %v80, %v164
    %v166 = vpop.f32.mrb[0].mxu0
    %v167 = vpop.f32.mrb[0].mxu0
    %v168 = vadd.f32 %v80, %v167
    %v169 = vpop.f32.mrb[0].mxu0
    %170 = vdwg.mxu0
    %v171 = vmax.f32 %v165, 0.0
    %v172 = vmax.f32 %v168, 0.0
    %v173 = vld [vmem:[#allocation2] sm:$0xff]
    %v174 = vld [vmem:[#allocation2 + $0x8] sm:$0xff]
    %v175 = vpack.c.bf16 %v172, %v171
    %v176 = vld [vmem:[#allocation6] sm:$0xf]
    %v177 = vld [vmem:[#allocation6 + $0x4] sm:$0xf]
    %v178 = vld [vmem:[#allocation6 + $0x8] sm:$0xf]
    %v179 = vld [vmem:[#allocation6 + $0xc] sm:$0xf]
    %v180 = vld [vmem:[#allocation6 + $0x10] sm:$0xf]
    %v181 = vld [vmem:[#allocation6 + $0x14] sm:$0xf]
    %v182 = vld [vmem:[#allocation6 + $0x18] sm:$0xf]
    %v183 = vld [vmem:[#allocation6 + $0x1c] sm:$0xf]
    %v184 = vld [vmem:[#allocation6 + $0x20] sm:$0xf]
    %v185 = vld [vmem:[#allocation6 + $0x24] sm:$0xf]
    %v186 = vld [vmem:[#allocation6 + $0x28] sm:$0xf]
    %v187 = vld [vmem:[#allocation6 + $0x2c] sm:$0xf]
    %v188 = vld [vmem:[#allocation6 + $0x30] sm:$0xf]
    %v189 = vld [vmem:[#allocation6 + $0x34] sm:$0xf]
    %v190 = vld [vmem:[#allocation6 + $0x38] sm:$0xf]
    %v191 = vld [vmem:[#allocation6 + $0x3c] sm:$0xf]
    %v208 = vunpack.c.l.b16 %v176
    %v209 = vunpack.c.l.b16 %v177
    %v210 = vunpack.c.l.b16 %v178
    %v211 = vunpack.c.l.b16 %v179
    %v212 = vunpack.c.l.b16 %v180
    %v213 = vunpack.c.l.b16 %v181
    %v214 = vunpack.c.l.b16 %v182
    %v215 = vunpack.c.l.b16 %v183
    %v216 = vunpack.c.l.b16 %v184
    %v217 = vunpack.c.l.b16 %v185
    %v218 = vunpack.c.l.b16 %v186
    %v219 = vunpack.c.l.b16 %v187
    %v220 = vunpack.c.l.b16 %v188
    %v221 = vunpack.c.l.b16 %v189
    %v222 = vunpack.c.l.b16 %v190
    %v223 = vunpack.c.l.b16 %v191
    %v224 = vpack.c.b16 %v209, %v208
    %v225 = vpack.c.b16 %v211, %v210
    %v226 = vpack.c.b16 %v213, %v212
    %v227 = vpack.c.b16 %v215, %v214
    %v228 = vpack.c.b16 %v217, %v216
    %v229 = vpack.c.b16 %v219, %v218
    %v230 = vpack.c.b16 %v221, %v220
    %v231 = vpack.c.b16 %v223, %v222
    %240 = vmatprep.subr.bf16.mxu0 0
    %241 = vmatpush1.bf16.msra.mxu0 %v224
    %242 = vmatprep.subr.bf16.mxu0 0
    %243 = vmatpush1.bf16.msra.mxu0 %v225
    %244 = vmatprep.subr.bf16.mxu0 0
    %245 = vmatpush1.bf16.msra.mxu0 %v226
    %246 = vmatprep.subr.bf16.mxu0 0
    %247 = vmatpush1.bf16.msra.mxu0 %v227
    %248 = vmatprep.subr.bf16.mxu0 0
    %249 = vmatpush1.bf16.msra.mxu0 %v228
    %250 = vmatprep.subr.bf16.mxu0 0
    %251 = vmatpush1.bf16.msra.mxu0 %v229
    %252 = vmatprep.subr.bf16.mxu0 0
    %253 = vmatpush1.bf16.msra.mxu0 %v230
    %254 = vmatprep.subr.bf16.mxu0 0
    %255 = vmatpush1.bf16.msra.mxu0 %v231
    %256 = vmatprep.subr.bf16.mxu0 0
    %257 = vmatpush1.bf16.msra.mxu0 0
    %258 = vmatprep.subr.bf16.mxu0 0
    %259 = vmatpush1.bf16.msra.mxu0 0
    %260 = vmatprep.subr.bf16.mxu0 0
    %261 = vmatpush1.bf16.msra.mxu0 0
    %262 = vmatprep.subr.bf16.mxu0 0
    %263 = vmatpush1.bf16.msra.mxu0 0
    %264 = vmatprep.subr.bf16.mxu0 0
    %265 = vmatpush1.bf16.msra.mxu0 0
    %266 = vmatprep.subr.bf16.mxu0 0
    %267 = vmatpush1.bf16.msra.mxu0 0
    %268 = vmatprep.subr.bf16.mxu0 0
    %269 = vmatpush1.bf16.msra.mxu0 0
    %270 = vmatprep.subr.bf16.mxu0 0
    %271 = vmatpush1.bf16.msra.mxu0 0
    %272 = vmatprep.mubr.bf16.mxu0 0
    %273 = vmatmul.mubr.bf16.gmra.mrb[0].mxu0 %v175
    %v274 = vpop.f32.mrb[0].mxu0
    %v275 = vadd.f32 0.0, %v274
    %v276 = vpop.f32.mrb[0].mxu0
    %v277 = vpop.f32.mrb[0].mxu0
    %v278 = vadd.f32 0.0, %v277
    %v279 = vpop.f32.mrb[0].mxu0
    %280 = vdwg.mxu0
    %v281 = vadd.f32 %v173, %v275
    %v282 = vadd.f32 %v174, %v278
    %283 = vst [vmem:[#allocation2] sm:$0xff] %v281
    %284 = vst [vmem:[#allocation2 + $0x8] sm:$0xff] %v282
    // Predicated region
    $region34: #{_forward.1} parent=1 // pred_check
      %p285 = pneg %p50
    $region35: #{_forward.1} parent=1 // pred_check_branch
      %287 = sbr.rel (%p285) target = $region37
    $region36: #{_forward.1} parent=1 // pred_region
      %v288 = vld [vmem:[#allocation2] sm:$0xff]
      %v289 = vld [vmem:[#allocation2 + $0x8] sm:$0xff]
      %v290 = vld [vmem:[%s4] sm:$0x1]
      %v292 = vlaneseq
      %v293 = vshrl.u32 %v292, 7
      %v294 = vsub.s32 0, %v293
      %v295 = vrot.slane %v290, %v294
      %v297 = vadd.f32 %v288, %v295
      %v298 = vadd.f32 %v289, %v295
      %v299 = vxor.u32 %v297, 2147483648
      %v300 = vxor.u32 %v298, 2147483648
      %v301 = vmul.f32 %v299, 1.442695
      %v302 = vpow.pop %v301
      %v303 = vmul.f32 %v300, 1.442695
      %v304 = vpow.pop %v303
      %v305 = vadd.f32 %v302, 1.0
      %v306 = vadd.f32 %v304, 1.0
      %v307 = vrcp.pop %v305
      %v308 = vmul.f32 1.0, %v307
      %v309 = vrcp.pop %v306
      %v310 = vmul.f32 1.0, %v309
      %311 = vst [vmem:[#allocation8] sm:$0xff] %v308
      %312 = vst [vmem:[#allocation8 + $0x8] sm:$0xff] %v310
    $region37: #{_forward.1} parent=1 // pred_fallthru
      _
    // Predicated region
    $region38: #{_forward.1} parent=1 // pred_check
      _
    $region39: #{_forward.1} parent=1 // pred_check_branch
      %314 = sbr.rel (0) target = $region41
    $region40: #{_forward.1} parent=1 // pred_region
      %s316 = ssub.s32 256, 256
      %317 = vsyncadd [#allocation5], %s316
      %s318 = sshll.u32 [#allocation8], 4
      %s319 = int_to_ptr.vmem [resolvable:$true] %s318
      %324 = dma.vmem_to_hbm [thread:$0]  %s319, 256, %s5, [#allocation5], 128, 128, 8
    $region41: #{_forward.1} parent=1 // pred_fallthru
      _
    // Predicated region
    $region42: #{_forward.1} parent=1 // pred_check
      _
    $region43: #{_forward.1} parent=1 // pred_check_branch
      %326 = sbr.rel (0) target = $region45
    $region44: #{_forward.1} parent=1 // pred_region
      %327 = dma.done [#allocation5], 256
    $region45: #{_forward.1} parent=1 // pred_fallthru
      _
    %328 = vsyncpa [#allocation4], 1
    %329 = vsyncpa [#allocation7], 1
    %330 = vsyncpa [#allocation5], 1

</llo_original>
